<compile_context>
chip_gen: v7x
topology: tpu7x:2x2x1
jax: 0.10.0
libtpu: 0.0.40
codegen_flags: <defaults>
</compile_context>

<pallas_src>
import functools

import jax
import jax.numpy as jnp
import numpy as np
from jax import lax
from jax.experimental import pallas as pl
from jax.experimental.pallas import tpu as pltpu


def _trans_model_kernel(
    head_ids, rel_ids, tail_ids,   # SMEM scalar-prefetch refs (consumed by index_maps)
    h_ref, r_ref, t_ref,           # gathered embedding rows, each (1, 1, D) in VMEM
    w_ref,                         # (2, D) linear weight (PyTorch layout) in VMEM
    b_ref,                         # (2,) bias in SMEM
    out_ref,                       # (1, 1, 128) lane-dense output block
    *, sigmoid,
):
    # TransE translation: o = h + r - t   (VPU, single row, no scratch)
    o = h_ref[0] + r_ref[0] - t_ref[0]                      # (1, D)

    # Linear(D, 2): VPU multiply + XLU lane reduce (MXU would be <2% utilized).
    prod = o * w_ref[...]                                   # (2, D) via sublane broadcast
    s = jnp.sum(prod, axis=-1, keepdims=True)               # (2, 1)
    l0 = s[0:1, 0:1] + b_ref[0]                             # (1, 1)
    l1 = s[1:2, 0:1] + b_ref[1]                             # (1, 1)

    if sigmoid:
        p0 = jax.nn.sigmoid(l0)
        p1 = jax.nn.sigmoid(l1)
    else:
        # Exact 2-class softmax: softmax([l0, l1]) == [sigmoid(l0-l1), sigmoid(l1-l0)].
        # Division stays on the EUP (general-N version: pl.reciprocal(sum_e, approx=True)).
        d = l0 - l1
        p0 = jax.nn.sigmoid(d)
        p1 = jax.nn.sigmoid(-d)

    # Lane-dense (1, 128) output row: [p0, p1, 0, 0, ...]
    lane = lax.broadcasted_iota(jnp.int32, (1, 128), 1)
    row = jnp.where(lane == 0, p0, jnp.where(lane == 1, p1, jnp.float32(0.0)))
    out_ref[0] = row


def trans_model_forward(head, rel, tail, ent_table, rel_table, w, b, *, sigmoid=False):
    """Pallas TransModel.forward: TransE score -> Linear(D, 2) -> softmax/sigmoid.

    `w` is the nn.Linear weight in PyTorch layout (2, D); `b` is (2,).
    Returns (batch, 2) float32 probabilities.
    """
    batch = head.shape[0]
    num_ents, dim = ent_table.shape
    num_rels = rel_table.shape[0]

    # Lane-dense embedding dim: pad D to a multiple of 128 with zeros (exact; padded
    # columns contribute 0 to the dot product).  In production do this once at
    # table-build time instead of per call.
    if dim % 128 != 0:
        pad = 128 - dim % 128
        ent_table = jnp.pad(ent_table, ((0, 0), (0, pad)))
        rel_table = jnp.pad(rel_table, ((0, 0), (0, pad)))
        w = jnp.pad(w, ((0, 0), (0, pad)))
        dim = dim + pad

    # View tables as (rows, 1, D) so each gathered block (1, 1, D) equals the full
    # trailing dims -> no (8, 128) tiling constraint on the gathered row axis.
    ent3 = ent_table.reshape(num_ents, 1, dim)
    rel3 = rel_table.reshape(num_rels, 1, dim)

    # Guard against silent OOB DMA gathers (ids are not otherwise bounds-checked).
    head = jnp.clip(head.astype(jnp.int32), 0, num_ents - 1)
    tail = jnp.clip(tail.astype(jnp.int32), 0, num_ents - 1)
    rel = jnp.clip(rel.astype(jnp.int32), 0, num_rels - 1)

    kernel = functools.partial(_trans_model_kernel, sigmoid=sigmoid)

    grid_spec = pltpu.PrefetchScalarGridSpec(
        num_scalar_prefetch=3,                 # head / rel / tail ids land in SMEM
        grid=(batch,),                         # one (h, r, t) triple per grid step
        in_specs=[
            # Row gathers driven by the scalar-prefetched ids: only 3 rows per step
            # move HBM->VMEM, double-buffered by the BlockSpec pipeline.
            pl.BlockSpec((1, 1, dim), lambda i, h, r, t: (h[i], 0, 0)),
            pl.BlockSpec((1, 1, dim), lambda i, h, r, t: (r[i], 0, 0)),
            pl.BlockSpec((1, 1, dim), lambda i, h, r, t: (t[i], 0, 0)),
            # Linear weight: tiny, same block every step.
            pl.BlockSpec((2, dim), lambda i, h, r, t: (0, 0)),
            # Bias: two scalars, kept in SMEM.
            pl.BlockSpec(memory_space=pltpu.MemorySpace.SMEM),
        ],
        out_specs=pl.BlockSpec((1, 1, 128), lambda i, h, r, t: (i, 0, 0)),
    )

    out = pl.pallas_call(
        kernel,
        out_shape=jax.ShapeDtypeStruct((batch, 1, 128), jnp.float32),
        grid_spec=grid_spec,
        compiler_params=pltpu.CompilerParams(
            # Batch steps are independent -> parallel (uses both TCs on v7x and
            # keeps the gather DMAs pipelined).
            dimension_semantics=("parallel",),
        ),
    )(head, rel, tail, ent3, rel3, ent3, w, b)

    return out[:, 0, :2]


def ref_forward(head, rel, tail, ent_table, rel_table, w, b, *, sigmoid=False):
    o = ent_table[head] + rel_table[rel] - ent_table[tail]
    logits = o @ w.T + b
    return jax.nn.sigmoid(logits) if sigmoid else jax.nn.softmax(logits, axis=-1)


if __name__ == "__main__":
    # Small shapes consistent with the module: a KG-embedding scorer.
    NUM_ENTS, NUM_RELS, DIM, BATCH = 64, 16, 128, 8

    key = jax.random.PRNGKey(0)
    k_ent, k_rel, k_w, k_b, k_h, k_r, k_t = jax.random.split(key, 7)

    # Deterministic synthetic parameters (no checkpoint load).
    ent_table = jax.random.normal(k_ent, (NUM_ENTS, DIM), dtype=jnp.float32) * 0.1
    rel_table = jax.random.normal(k_rel, (NUM_RELS, DIM), dtype=jnp.float32) * 0.1
    w = jax.random.normal(k_w, (2, DIM), dtype=jnp.float32) * 0.1   # nn.Linear weight (out, in)
    b = jax.random.normal(k_b, (2,), dtype=jnp.float32) * 0.1

    # Inputs: (head, rel, tail) index triples.
    head = jax.random.randint(k_h, (BATCH,), 0, NUM_ENTS, dtype=jnp.int32)
    rel = jax.random.randint(k_r, (BATCH,), 0, NUM_RELS, dtype=jnp.int32)
    tail = jax.random.randint(k_t, (BATCH,), 0, NUM_ENTS, dtype=jnp.int32)

    # Softmax head (config.sigmoid = False).
    out = trans_model_forward(head, rel, tail, ent_table, rel_table, w, b, sigmoid=False)
    out = jax.block_until_ready(out)
    expected = ref_forward(head, rel, tail, ent_table, rel_table, w, b, sigmoid=False)
    np.testing.assert_allclose(np.asarray(out), np.asarray(expected), rtol=1e-5, atol=1e-6)

    # Sigmoid head (config.sigmoid = True).
    out_s = trans_model_forward(head, rel, tail, ent_table, rel_table, w, b, sigmoid=True)
    out_s = jax.block_until_ready(out_s)
    expected_s = ref_forward(head, rel, tail, ent_table, rel_table, w, b, sigmoid=True)
    np.testing.assert_allclose(np.asarray(out_s), np.asarray(expected_s), rtol=1e-5, atol=1e-6)

    print("KERNEL_OK")
</pallas_src>

<mosaic_0001>
module attributes {stable_mosaic.version = 11 : i64} {
  func.func @_trans_model_kernel(%arg0: i32, %arg1: memref<8xi32, #tpu.memory_space<smem>>, %arg2: memref<8xi32, #tpu.memory_space<smem>>, %arg3: memref<8xi32, #tpu.memory_space<smem>>, %arg4: memref<1x1x128xf32, #tpu.memory_space<vmem>>, %arg5: memref<1x1x128xf32, #tpu.memory_space<vmem>>, %arg6: memref<1x1x128xf32, #tpu.memory_space<vmem>>, %arg7: memref<2x128xf32, #tpu.memory_space<vmem>>, %arg8: memref<2xf32, #tpu.memory_space<smem>>, %arg9: memref<1x1x128xf32, #tpu.memory_space<vmem>>) attributes {dimension_semantics = [#tpu.dimension_semantics<parallel>], iteration_bounds = array<i64: 8>, scalar_prefetch = 3 : i64, scratch_operands = 0 : i64, tpu.core_type = #tpu.core_type<tc>, window_params = [{transform_indices = @transform_0, window_bounds = array<i64: 1, 1, 128>}, {transform_indices = @transform_1, window_bounds = array<i64: 1, 1, 128>}, {transform_indices = @transform_2, window_bounds = array<i64: 1, 1, 128>}, {pipeline_mode = #tpu.pipeline_mode<synchronous>, transform_indices = @transform_3, window_bounds = array<i64: 2, 128>}, {transform_indices = @transform_4, window_bounds = array<i64: 2>}, {transform_indices = @transform_5, window_bounds = array<i64: 1, 1, 128>}]} {
    %c0 = arith.constant 0 : index
    %c0_0 = arith.constant 0 : index
    %c0_1 = arith.constant 0 : index
    %0 = vector.load %arg4[%c0, %c0_0, %c0_1] : memref<1x1x128xf32, #tpu.memory_space<vmem>>, vector<1x1x128xf32>
    %1 = vector.shape_cast %0 : vector<1x1x128xf32> to vector<1x128xf32>
    %c0_2 = arith.constant 0 : index
    %c0_3 = arith.constant 0 : index
    %c0_4 = arith.constant 0 : index
    %2 = vector.load %arg5[%c0_2, %c0_3, %c0_4] : memref<1x1x128xf32, #tpu.memory_space<vmem>>, vector<1x1x128xf32>
    %3 = vector.shape_cast %2 : vector<1x1x128xf32> to vector<1x128xf32>
    %4 = arith.addf %1, %3 : vector<1x128xf32>
    %c0_5 = arith.constant 0 : index
    %c0_6 = arith.constant 0 : index
    %c0_7 = arith.constant 0 : index
    %5 = vector.load %arg6[%c0_5, %c0_6, %c0_7] : memref<1x1x128xf32, #tpu.memory_space<vmem>>, vector<1x1x128xf32>
    %6 = vector.shape_cast %5 : vector<1x1x128xf32> to vector<1x128xf32>
    %7 = arith.subf %4, %6 : vector<1x128xf32>
    %c0_8 = arith.constant 0 : index
    %c0_9 = arith.constant 0 : index
    %8 = vector.load %arg7[%c0_8, %c0_9] : memref<2x128xf32, #tpu.memory_space<vmem>>, vector<2x128xf32>
    %9 = vector.broadcast %7 : vector<1x128xf32> to vector<2x128xf32>
    %10 = arith.mulf %9, %8 : vector<2x128xf32>
    %cst = arith.constant dense<0.000000e+00> : vector<2xf32>
    %11 = vector.multi_reduction <add>, %10, %cst [1] : vector<2x128xf32> to vector<2xf32>
    %12 = vector.shape_cast %11 : vector<2xf32> to vector<2x1xf32>
    %13 = vector.extract_strided_slice %12 {offsets = [0, 0], sizes = [1, 1], strides = [1, 1]} : vector<2x1xf32> to vector<1x1xf32>
    %c0_10 = arith.constant 0 : index
    %14 = memref.load %arg8[%c0_10] : memref<2xf32, #tpu.memory_space<smem>>
    %15 = vector.broadcast %14 : f32 to vector<1x1xf32>
    %16 = arith.addf %13, %15 : vector<1x1xf32>
    %17 = vector.extract_strided_slice %12 {offsets = [1, 0], sizes = [1, 1], strides = [1, 1]} : vector<2x1xf32> to vector<1x1xf32>
    %c1 = arith.constant 1 : index
    %18 = memref.load %arg8[%c1] : memref<2xf32, #tpu.memory_space<smem>>
    %19 = vector.broadcast %18 : f32 to vector<1x1xf32>
    %20 = arith.addf %17, %19 : vector<1x1xf32>
    %21 = arith.subf %16, %20 : vector<1x1xf32>
    %22 = arith.negf %21 : vector<1x1xf32>
    %23 = math.exp %22 : vector<1x1xf32>
    %cst_11 = arith.constant 1.000000e+00 : f32
    %24 = vector.broadcast %cst_11 : f32 to vector<1x1xf32>
    %25 = arith.addf %24, %23 : vector<1x1xf32>
    %26 = arith.divf %24, %25 : vector<1x1xf32>
    %cst_12 = arith.constant 0.000000e+00 : f32
    %27 = vector.broadcast %cst_12 : f32 to vector<1x1xf32>
    %28 = arith.subf %27, %21 : vector<1x1xf32>
    %29 = arith.negf %28 : vector<1x1xf32>
    %30 = math.exp %29 : vector<1x1xf32>
    %cst_13 = arith.constant 1.000000e+00 : f32
    %31 = vector.broadcast %cst_13 : f32 to vector<1x1xf32>
    %32 = arith.addf %31, %30 : vector<1x1xf32>
    %33 = arith.divf %31, %32 : vector<1x1xf32>
    %34 = tpu.iota {dimensions = array<i32: 1>} : vector<1x128xi32>
    %c0_i32 = arith.constant 0 : i32
    %35 = vector.broadcast %c0_i32 : i32 to vector<1x128xi32>
    %36 = arith.cmpi eq, %34, %35 : vector<1x128xi32>
    %c1_i32 = arith.constant 1 : i32
    %37 = vector.broadcast %c1_i32 : i32 to vector<1x128xi32>
    %38 = arith.cmpi eq, %34, %37 : vector<1x128xi32>
    %cst_14 = arith.constant 0.000000e+00 : f32
    %39 = vector.shape_cast %33 : vector<1x1xf32> to vector<1x1xf32>
    %40 = vector.broadcast %39 : vector<1x1xf32> to vector<1x128xf32>
    %41 = vector.broadcast %cst_14 : f32 to vector<1x128xf32>
    %42 = arith.select %38, %40, %41 : vector<1x128xi1>, vector<1x128xf32>
    %43 = vector.shape_cast %26 : vector<1x1xf32> to vector<1x1xf32>
    %44 = vector.broadcast %43 : vector<1x1xf32> to vector<1x128xf32>
    %45 = arith.select %36, %44, %42 : vector<1x128xi1>, vector<1x128xf32>
    %c0_15 = arith.constant 0 : index
    %c0_16 = arith.constant 0 : index
    %c0_17 = arith.constant 0 : index
    %46 = vector.load %arg9[%c0_15, %c0_16, %c0_17] : memref<1x1x128xf32, #tpu.memory_space<vmem>>, vector<1x1x128xf32>
    %47 = vector.shape_cast %46 : vector<1x1x128xf32> to vector<1x128xf32>
    %48 = vector.shape_cast %45 : vector<1x128xf32> to vector<1x1x128xf32>
    tpu.vector_store %arg9[%c0_15, %c0_16, %c0_17], %48 {strides = array<i32>} : memref<1x1x128xf32, #tpu.memory_space<vmem>>, vector<1x1x128xf32>,
    return
  }
  func.func @transform_0(%arg0: i32, %arg1: memref<8xi32, #tpu.memory_space<smem>>, %arg2: memref<8xi32, #tpu.memory_space<smem>>, %arg3: memref<8xi32, #tpu.memory_space<smem>>) -> (i32, i32, i32) {
    %0 = arith.index_cast %arg0 : i32 to index
    %1 = memref.load %arg1[%0] : memref<8xi32, #tpu.memory_space<smem>>
    %c0_i32 = arith.constant 0 : i32
    %c0_i32_0 = arith.constant 0 : i32
    %c0_i32_1 = arith.constant 0 : i32
    return %1, %c0_i32, %c0_i32_0 : i32, i32, i32
  }
  func.func @transform_1(%arg0: i32, %arg1: memref<8xi32, #tpu.memory_space<smem>>, %arg2: memref<8xi32, #tpu.memory_space<smem>>, %arg3: memref<8xi32, #tpu.memory_space<smem>>) -> (i32, i32, i32) {
    %0 = arith.index_cast %arg0 : i32 to index
    %1 = memref.load %arg2[%0] : memref<8xi32, #tpu.memory_space<smem>>
    %c0_i32 = arith.constant 0 : i32
    %c0_i32_0 = arith.constant 0 : i32
    %c0_i32_1 = arith.constant 0 : i32
    return %1, %c0_i32, %c0_i32_0 : i32, i32, i32
  }
  func.func @transform_2(%arg0: i32, %arg1: memref<8xi32, #tpu.memory_space<smem>>, %arg2: memref<8xi32, #tpu.memory_space<smem>>, %arg3: memref<8xi32, #tpu.memory_space<smem>>) -> (i32, i32, i32) {
    %0 = arith.index_cast %arg0 : i32 to index
    %1 = memref.load %arg3[%0] : memref<8xi32, #tpu.memory_space<smem>>
    %c0_i32 = arith.constant 0 : i32
    %c0_i32_0 = arith.constant 0 : i32
    %c0_i32_1 = arith.constant 0 : i32
    return %1, %c0_i32, %c0_i32_0 : i32, i32, i32
  }
  func.func @transform_3(%arg0: i32, %arg1: memref<8xi32, #tpu.memory_space<smem>>, %arg2: memref<8xi32, #tpu.memory_space<smem>>, %arg3: memref<8xi32, #tpu.memory_space<smem>>) -> (i32, i32) {
    %c0_i32 = arith.constant 0 : i32
    %c0_i32_0 = arith.constant 0 : i32
    %c0_i32_1 = arith.constant 0 : i32
    return %c0_i32, %c0_i32_0 : i32, i32
  }
  func.func @transform_4(%arg0: i32, %arg1: memref<8xi32, #tpu.memory_space<smem>>, %arg2: memref<8xi32, #tpu.memory_space<smem>>, %arg3: memref<8xi32, #tpu.memory_space<smem>>) -> i32 {
    %c0_i32 = arith.constant 0 : i32
    %c0_i32_0 = arith.constant 0 : i32
    return %c0_i32 : i32
  }
  func.func @transform_5(%arg0: i32, %arg1: memref<8xi32, #tpu.memory_space<smem>>, %arg2: memref<8xi32, #tpu.memory_space<smem>>, %arg3: memref<8xi32, #tpu.memory_space<smem>>) -> (i32, i32, i32) {
    %c0_i32 = arith.constant 0 : i32
    %c0_i32_0 = arith.constant 0 : i32
    %c0_i32_1 = arith.constant 0 : i32
    return %arg0, %c0_i32, %c0_i32_0 : i32, i32, i32
  }
}

</mosaic_0001>

<llo_original>
// kernel: tpu_custom_call.1
$region0: #{tpu_custom_call.1}
  #allocation0 [shape = 'u32[]', space=smem, size = 0x4, offset = 0x4, fixed_abs, tag = 'smem constant byte address 0x4 - core index']
  #allocation1 [shape = 'u32[144,128]{1,0:T(1,128)}', space=vmem, size = 0x12000, scoped, tag = 'internal scratch']
  #allocation2 [shape = 's32[1]{0}', space=sflag, size = 0x4, scoped, tag = 'scoped memory for tpu_custom_call.1']
  #allocation3 [shape = 'u8[512]{0}', space=smem, size = 0x200, scoped, tag = 'prefetched SMEM operand 0']
  #allocation4 [shape = 'u8[512]{0}', space=smem, size = 0x200, scoped, tag = 'prefetched SMEM operand 1']
  #allocation5 [shape = 'u8[512]{0}', space=smem, size = 0x200, scoped, tag = 'prefetched SMEM operand 2']
  %s0 = inlined_call_operand.hbm [shape: s32[8], index: 0, kind: input, shape index: {}]
  %s1 = inlined_call_operand.vmem [shape: s32[8], index: 1, kind: input, shape index: {}]
  %s2 = inlined_call_operand.vmem [shape: s32[8], index: 2, kind: input, shape index: {}]
  %s3 = inlined_call_operand.hbm [shape: f32[64,1,128], index: 3, kind: input, shape index: {}]
  %s4 = inlined_call_operand.hbm [shape: f32[16,1,128], index: 4, kind: input, shape index: {}]
  %s5 = inlined_call_operand.hbm [shape: f32[64,1,128], index: 5, kind: input, shape index: {}]
  %s6 = inlined_call_operand.vmem [shape: f32[2,128], index: 6, kind: input, shape index: {}]
  %s7 = inlined_call_operand.vmem [shape: f32[2], index: 7, kind: input, shape index: {}]
  %s8 = inlined_call_operand.hbm [shape: f32[8,1,128], index: 8, kind: output, shape index: {}]
  %s9 = sld [smem:[#allocation0]]
  $region69: #{tpu_custom_call.1} parent=0
    _
  %s11 = ssub.s32 1, %s9
  %s12 = scalar_select 0, %s11, %s9
  %14 = dma.hbm_to_smem %s0, 16, [#allocation3], [#allocation2]
  %s15 = sshll.u32 %s1, 4
  %s16 = int_to_ptr.vmem [resolvable:$true] %s15
  %18 = dma.vmem_to_smem %s16, 16, [#allocation4], [#allocation2]
  %s19 = sshll.u32 %s2, 4
  %s20 = int_to_ptr.vmem [resolvable:$true] %s19
  %22 = dma.vmem_to_smem %s20, 16, [#allocation5], [#allocation2]
  %23 = dma.done [#allocation2], 48
  %24 = sfence
  $region1: #{tpu_custom_call.1} parent=0
    #allocation6 [shape = 'u8[1024]{0}', space=vmem, size = 0x400, scoped, tag = 'input window, operand 3']
    #allocation7 [shape = 's32[2]{0}', space=sflag, size = 0x8, scoped, tag = 'scoped memory for tpu_custom_call.1']
    #allocation8 [shape = 's32[2]{0}', space=sflag, size = 0x8, scoped, tag = 'scoped memory for tpu_custom_call.1']
    #allocation9 [shape = 's32[2]{0}', space=sflag, size = 0x8, scoped, tag = 'scoped memory for tpu_custom_call.1']
    #allocation10 [shape = 'u8[1024]{0}', space=vmem, size = 0x400, scoped, tag = 'input window, operand 4']
    #allocation11 [shape = 's32[2]{0}', space=sflag, size = 0x8, scoped, tag = 'scoped memory for tpu_custom_call.1']
    #allocation12 [shape = 'u8[1024]{0}', space=vmem, size = 0x400, scoped, tag = 'input window, operand 5']
    #allocation13 [shape = 'u8[512]{0}', space=smem, size = 0x200, scoped, tag = 'input window, operand 7, single buffered']
    #allocation14 [shape = 'u8[1024]{0}', space=vmem, size = 0x400, scoped, tag = 'output window, operand 0']
    %25 = vsyncpa [#allocation7], 0
    %s26 = scalar_lea.sflag [#allocation7], 1
    %27 = vsyncpa %s26, 0
    %28 = vsyncpa [#allocation11], 0
    %s29 = scalar_lea.sflag [#allocation11], 1
    %30 = vsyncpa %s29, 0
    %31 = vsyncpa [#allocation9], 0
    %32 = vsyncpa [#allocation8], 0
    %s33 = scalar_lea.sflag [#allocation8], 1
    %34 = vsyncpa %s33, 0
    loop: start=0, step=1, limit=10
    $region2: #{tpu_custom_call.1} parent=1 // loop_pre_header
      _
    $region3: #{tpu_custom_call.1} parent=1 // loop_header
      %s36 = sphi 0, %s40
      %p37 = scmp.ge.s32.totalorder %s36, 10
      %s48 = sphi 0, %s50
      %s51 = sphi 0, %s48
      %s52 = sphi 0, %s51
      %s68 = sphi 0, %s52
      %s76 = sphi 0, %s78
      %s79 = sphi 0, %s76
      %s80 = sphi 0, %s79
      %s96 = sphi 0, %s80
      %s104 = sphi 0, %s106
      %s107 = sphi 0, %s104
      %s108 = sphi 0, %s107
      %s124 = sphi 0, %s108
      %s128 = sphi 0, %s128
      %s130 = sphi 0, %s128
      %s131 = sphi 0, %s130
      %s145 = sphi 0, %s131
      %s149 = sphi 0, %s149
      %s151 = sphi 0, %s149
      %s152 = sphi 0, %s151
      %s166 = sphi 0, %s152
      %s172 = sphi 0, %s174
      %s175 = sphi 0, %s172
      %s176 = sphi 0, %s175
      %s192 = sphi 0, %s176
    $region4: #{tpu_custom_call.1} parent=1 // loop_header_branch
      %39 = sbr.rel (%p37) target = $region8
    $region5: #{tpu_custom_call.1} parent=1 // loop_body
      %s41 = ssub.s32 %s36, 1
      %s42 = ssub.s32 %s36, 2
      %s43 = sadd.s32 %s36, 1
      %s44 = sld [smem:[#allocation3 + %s36]]
      %s45 = sld [smem:[#allocation3 + %s43]]
      %s46 = ssub.s32 %s44, %s45
      %p47 = scmp.eq.s32.totalorder %s46, 0
      %s49 = sadd.s32 %s48, 1
      %s50 = scalar_select %p47, %s48, %s49
      %p53 = pneg %p47
      %p54 = scmp.eq.s32.totalorder %s36, 7
      %p55 = por %p53, %p54
      %p56 = scmp.ne.s32.totalorder %s48, %s51
      %p57 = scmp.eq.s32.totalorder %s36, 0
      %p58 = por %p56, %p57
      %p59 = scmp.ne.s32.totalorder %s48, %s51
      %p60 = scmp.eq.s32.totalorder %s41, 7
      %p61 = por %p59, %p60
      %p62 = scmp.ne.s32.totalorder %s51, %s52
      %p63 = scmp.eq.s32.totalorder %s41, 0
      %p64 = por %p62, %p63
      %p65 = scmp.ne.s32.totalorder %s51, %s52
      %p66 = scmp.eq.s32.totalorder %s42, 7
      %p67 = por %p65, %p66
      %p69 = scmp.ne.s32.totalorder %s52, %s68
      %p70 = scmp.eq.s32.totalorder %s42, 0
      %p71 = por %p69, %p70
      %s72 = sld [smem:[#allocation4 + %s36]]
      %s73 = sld [smem:[#allocation4 + %s43]]
      %s74 = ssub.s32 %s72, %s73
      %p75 = scmp.eq.s32.totalorder %s74, 0
      %s77 = sadd.s32 %s76, 1
      %s78 = scalar_select %p75, %s76, %s77
      %p81 = pneg %p75
      %p82 = scmp.eq.s32.totalorder %s36, 7
      %p83 = por %p81, %p82
      %p84 = scmp.ne.s32.totalorder %s76, %s79
      %p85 = scmp.eq.s32.totalorder %s36, 0
      %p86 = por %p84, %p85
      %p87 = scmp.ne.s32.totalorder %s76, %s79
      %p88 = scmp.eq.s32.totalorder %s41, 7
      %p89 = por %p87, %p88
      %p90 = scmp.ne.s32.totalorder %s79, %s80
      %p91 = scmp.eq.s32.totalorder %s41, 0
      %p92 = por %p90, %p91
      %p93 = scmp.ne.s32.totalorder %s79, %s80
      %p94 = scmp.eq.s32.totalorder %s42, 7
      %p95 = por %p93, %p94
      %p97 = scmp.ne.s32.totalorder %s80, %s96
      %p98 = scmp.eq.s32.totalorder %s42, 0
      %p99 = por %p97, %p98
      %s100 = sld [smem:[#allocation5 + %s36]]
      %s101 = sld [smem:[#allocation5 + %s43]]
      %s102 = ssub.s32 %s100, %s101
      %p103 = scmp.eq.s32.totalorder %s102, 0
      %s105 = sadd.s32 %s104, 1
      %s106 = scalar_select %p103, %s104, %s105
      %p109 = pneg %p103
      %p110 = scmp.eq.s32.totalorder %s36, 7
      %p111 = por %p109, %p110
      %p112 = scmp.ne.s32.totalorder %s104, %s107
      %p113 = scmp.eq.s32.totalorder %s36, 0
      %p114 = por %p112, %p113
      %p115 = scmp.ne.s32.totalorder %s104, %s107
      %p116 = scmp.eq.s32.totalorder %s41, 7
      %p117 = por %p115, %p116
      %p118 = scmp.ne.s32.totalorder %s107, %s108
      %p119 = scmp.eq.s32.totalorder %s41, 0
      %p120 = por %p118, %p119
      %p121 = scmp.ne.s32.totalorder %s107, %s108
      %p122 = scmp.eq.s32.totalorder %s42, 7
      %p123 = por %p121, %p122
      %p125 = scmp.ne.s32.totalorder %s108, %s124
      %p126 = scmp.eq.s32.totalorder %s42, 0
      %p127 = por %p125, %p126
      %s129 = sadd.s32 %s128, 1
      %p132 = scmp.eq.s32.totalorder %s36, 7
      %p133 = scmp.ne.s32.totalorder %s128, %s130
      %p134 = scmp.eq.s32.totalorder %s36, 0
      %p135 = por %p133, %p134
      %p136 = scmp.ne.s32.totalorder %s128, %s130
      %p137 = scmp.eq.s32.totalorder %s41, 7
      %p138 = por %p136, %p137
      %p139 = scmp.ne.s32.totalorder %s130, %s131
      %p140 = scmp.eq.s32.totalorder %s41, 0
      %p141 = por %p139, %p140
      %p142 = scmp.ne.s32.totalorder %s130, %s131
      %p143 = scmp.eq.s32.totalorder %s42, 7
      %p144 = por %p142, %p143
      %p146 = scmp.ne.s32.totalorder %s131, %s145
      %p147 = scmp.eq.s32.totalorder %s42, 0
      %p148 = por %p146, %p147
      %s150 = sadd.s32 %s149, 1
      %p153 = scmp.eq.s32.totalorder %s36, 7
      %p154 = scmp.ne.s32.totalorder %s149, %s151
      %p155 = scmp.eq.s32.totalorder %s36, 0
      %p156 = por %p154, %p155
      %p157 = scmp.ne.s32.totalorder %s149, %s151
      %p158 = scmp.eq.s32.totalorder %s41, 7
      %p159 = por %p157, %p158
      %p160 = scmp.ne.s32.totalorder %s151, %s152
      %p161 = scmp.eq.s32.totalorder %s41, 0
      %p162 = por %p160, %p161
      %p163 = scmp.ne.s32.totalorder %s151, %s152
      %p164 = scmp.eq.s32.totalorder %s42, 7
      %p165 = por %p163, %p164
      %p167 = scmp.ne.s32.totalorder %s152, %s166
      %p168 = scmp.eq.s32.totalorder %s42, 0
      %p169 = por %p167, %p168
      %s170 = ssub.s32 %s36, %s43
      %p171 = scmp.eq.s32.totalorder %s170, 0
      %s173 = sadd.s32 %s172, 1
      %s174 = scalar_select %p171, %s172, %s173
      %p177 = pneg %p171
      %p178 = scmp.eq.s32.totalorder %s36, 7
      %p179 = por %p177, %p178
      %p180 = scmp.ne.s32.totalorder %s172, %s175
      %p181 = scmp.eq.s32.totalorder %s36, 0
      %p182 = por %p180, %p181
      %p183 = scmp.ne.s32.totalorder %s172, %s175
      %p184 = scmp.eq.s32.totalorder %s41, 7
      %p185 = por %p183, %p184
      %p186 = scmp.ne.s32.totalorder %s175, %s176
      %p187 = scmp.eq.s32.totalorder %s41, 0
      %p188 = por %p186, %p187
      %p189 = scmp.ne.s32.totalorder %s175, %s176
      %p190 = scmp.eq.s32.totalorder %s42, 7
      %p191 = por %p189, %p190
      %p193 = scmp.ne.s32.totalorder %s176, %s192
      %p194 = scmp.eq.s32.totalorder %s42, 0
      %p195 = por %p193, %p194
      %p196 = scmp.le.s32.totalorder 1, %s36
      %p197 = scmp.lt.s32.totalorder %s36, 9
      %p198 = pnand %p196, %p197
      %p199 = pneg %p198
      // Predicated region
      $region9: #{tpu_custom_call.1} parent=5 // pred_check
        _
      $region10: #{tpu_custom_call.1} parent=5 // pred_check_branch
        %201 = sbr.rel (%p198) target = $region12
      $region11: #{tpu_custom_call.1} parent=5 // pred_region
        %s202 = ssub.s32 %s36, 1
        // Predicated region
        $region13: #{tpu_custom_call.1} parent=11 // pred_check
          %p203 = pneg %p141
        $region14: #{tpu_custom_call.1} parent=11 // pred_check_branch
          %205 = sbr.rel (%p203) target = $region16
        $region15: #{tpu_custom_call.1} parent=11 // pred_region
          _
        $region16: #{tpu_custom_call.1} parent=11 // pred_fallthru
          _
        // Predicated region
        $region17: #{tpu_custom_call.1} parent=11 // pred_check
          %p206 = pneg %p162
        $region18: #{tpu_custom_call.1} parent=11 // pred_check_branch
          %208 = sbr.rel (%p206) target = $region20
        $region19: #{tpu_custom_call.1} parent=11 // pred_region
          %s210 = ssub.s32 16, 16
          %211 = vsyncadd [#allocation9], %s210
          %s213 = sshll.u32 %s7, 4
          %s214 = int_to_ptr.vmem [resolvable:$true] %s213
          %216 = dma.vmem_to_smem %s214, 16, [#allocation13], [#allocation9]
        $region20: #{tpu_custom_call.1} parent=11 // pred_fallthru
          _
      $region12: #{tpu_custom_call.1} parent=5 // pred_fallthru
        _
      %p217 = scmp.lt.s32.totalorder %s36, 8
      // Predicated region
      $region21: #{tpu_custom_call.1} parent=5 // pred_check
        %p218 = pneg %p217
      $region22: #{tpu_custom_call.1} parent=5 // pred_check_branch
        %220 = sbr.rel (%p218) target = $region24
      $region23: #{tpu_custom_call.1} parent=5 // pred_region
        // Predicated region
        $region25: #{tpu_custom_call.1} parent=23 // pred_check
          %p221 = pneg %p58
        $region26: #{tpu_custom_call.1} parent=23 // pred_check_branch
          %223 = sbr.rel (%p221) target = $region28
        $region27: #{tpu_custom_call.1} parent=23 // pred_region
          %s224 = sand.u32 %s48, 1
          %s225 = scalar_lea.sflag [#allocation7], %s224
          %s226 = sand.u32 %s48, 1
          %s227 = scalar_lea.vmem [#allocation6], %s226
          %s228 = sld [smem:[#allocation3 + %s36]]
          %s230 = ssub.s32 16, 16
          %231 = vsyncadd %s225, %s230
          %s232 = smul.addr %s228, 16
          %s233 = scalar_lea.hbm %s3, %s232
          %s235 = sshll.u32 %s227, 4
          %s236 = int_to_ptr.vmem [resolvable:$true] %s235
          %238 = dma.hbm_to_vmem [thread:$0]  %s233, 16, %s236, %s225
        $region28: #{tpu_custom_call.1} parent=23 // pred_fallthru
          _
        // Predicated region
        $region29: #{tpu_custom_call.1} parent=23 // pred_check
          %p239 = pneg %p86
        $region30: #{tpu_custom_call.1} parent=23 // pred_check_branch
          %241 = sbr.rel (%p239) target = $region32
        $region31: #{tpu_custom_call.1} parent=23 // pred_region
          %s242 = sand.u32 %s36, 1
          %s243 = scalar_lea.sflag [#allocation11], %s242
          %s244 = sand.u32 %s76, 1
          %s245 = scalar_lea.vmem [#allocation10], %s244
          %s246 = sld [smem:[#allocation4 + %s36]]
          %s248 = ssub.s32 16, 16
          %249 = vsyncadd %s243, %s248
          %s250 = smul.addr %s246, 16
          %s251 = scalar_lea.hbm %s4, %s250
          %s253 = sshll.u32 %s245, 4
          %s254 = int_to_ptr.vmem [resolvable:$true] %s253
          %256 = dma.hbm_to_vmem [thread:$0]  %s251, 16, %s254, %s243
        $region32: #{tpu_custom_call.1} parent=23 // pred_fallthru
          _
        // Predicated region
        $region33: #{tpu_custom_call.1} parent=23 // pred_check
          %p257 = pneg %p114
        $region34: #{tpu_custom_call.1} parent=23 // pred_check_branch
          %259 = sbr.rel (%p257) target = $region36
        $region35: #{tpu_custom_call.1} parent=23 // pred_region
          %s260 = sand.u32 %s36, 1
          %s261 = scalar_lea.sflag [#allocation11], %s260
          %s262 = sand.u32 %s104, 1
          %s263 = scalar_lea.vmem [#allocation12], %s262
          %s264 = sld [smem:[#allocation5 + %s36]]
          %s266 = ssub.s32 16, 16
          %267 = vsyncadd %s261, %s266
          %s268 = smul.addr %s264, 16
          %s269 = scalar_lea.hbm %s5, %s268
          %s271 = sshll.u32 %s263, 4
          %s272 = int_to_ptr.vmem [resolvable:$true] %s271
          %274 = dma.hbm_to_vmem [thread:$0]  %s269, 16, %s272, %s261
        $region36: #{tpu_custom_call.1} parent=23 // pred_fallthru
          _
      $region24: #{tpu_custom_call.1} parent=5 // pred_fallthru
        _
      %p275 = scmp.le.s32.totalorder 1, %s36
      %p276 = scmp.lt.s32.totalorder %s36, 9
      %p277 = pnand %p275, %p276
      %p278 = pneg %p277
      // Predicated region
      $region37: #{tpu_custom_call.1} parent=5 // pred_check
        _
      $region38: #{tpu_custom_call.1} parent=5 // pred_check_branch
        %280 = sbr.rel (%p277) target = $region40
      $region39: #{tpu_custom_call.1} parent=5 // pred_region
        %s281 = ssub.s32 %s36, 1
        %s282 = sand.u32 %s51, 1
        %s283 = scalar_lea.sflag [#allocation7], %s282
        %s284 = sand.u32 %s51, 1
        %s285 = scalar_lea.vmem [#allocation6], %s284
        // Predicated region
        $region41: #{tpu_custom_call.1} parent=39 // pred_check
          %p286 = pneg %p64
        $region42: #{tpu_custom_call.1} parent=39 // pred_check_branch
          %288 = sbr.rel (%p286) target = $region44
        $region43: #{tpu_custom_call.1} parent=39 // pred_region
          %289 = dma.done %s283, 16
        $region44: #{tpu_custom_call.1} parent=39 // pred_fallthru
          _
        %s290 = sand.u32 %s41, 1
        %s291 = scalar_lea.sflag [#allocation11], %s290
        %s292 = sand.u32 %s79, 1
        %s293 = scalar_lea.vmem [#allocation10], %s292
        // Predicated region
        $region45: #{tpu_custom_call.1} parent=39 // pred_check
          %p294 = pneg %p92
        $region46: #{tpu_custom_call.1} parent=39 // pred_check_branch
          %296 = sbr.rel (%p294) target = $region48
        $region47: #{tpu_custom_call.1} parent=39 // pred_region
          %297 = dma.done %s291, 16
        $region48: #{tpu_custom_call.1} parent=39 // pred_fallthru
          _
        %s298 = sand.u32 %s41, 1
        %s299 = scalar_lea.sflag [#allocation11], %s298
        %s300 = sand.u32 %s107, 1
        %s301 = scalar_lea.vmem [#allocation12], %s300
        // Predicated region
        $region49: #{tpu_custom_call.1} parent=39 // pred_check
          %p302 = pneg %p120
        $region50: #{tpu_custom_call.1} parent=39 // pred_check_branch
          %304 = sbr.rel (%p302) target = $region52
        $region51: #{tpu_custom_call.1} parent=39 // pred_region
          %305 = dma.done %s299, 16
        $region52: #{tpu_custom_call.1} parent=39 // pred_fallthru
          _
        // Predicated region
        $region53: #{tpu_custom_call.1} parent=39 // pred_check
          %p306 = pneg %p162
        $region54: #{tpu_custom_call.1} parent=39 // pred_check_branch
          %308 = sbr.rel (%p306) target = $region56
        $region55: #{tpu_custom_call.1} parent=39 // pred_region
          %309 = dma.done [#allocation9], 16
        $region56: #{tpu_custom_call.1} parent=39 // pred_fallthru
          _
        %310 = sfence
        %s311 = sand.u32 %s51, 1
        %s312 = scalar_lea.sflag [#allocation7], %s311
        %s313 = sand.u32 %s51, 1
        %s314 = scalar_lea.vmem [#allocation6], %s313
        %p315 = pneg %p64
        %p316 = pneg %p61
        %s317 = sand.u32 %s41, 1
        %s318 = scalar_lea.sflag [#allocation11], %s317
        %s319 = sand.u32 %s79, 1
        %s320 = scalar_lea.vmem [#allocation10], %s319
        %p321 = pneg %p92
        %p322 = pneg %p89
        %s323 = sand.u32 %s41, 1
        %s324 = scalar_lea.sflag [#allocation11], %s323
        %s325 = sand.u32 %s107, 1
        %s326 = scalar_lea.vmem [#allocation12], %s325
        %p327 = pneg %p120
        %p328 = pneg %p117
        %p329 = pneg %p141
        %p330 = pneg %p138
        %p331 = pneg %p162
        %p332 = pneg %p159
        %p333 = pneg %p188
        %p334 = pneg %p185
        %s335 = sand.u32 %s175, 1
        %s336 = scalar_lea.sflag [#allocation8], %s335
        %s337 = sand.u32 %s175, 1
        %s338 = scalar_lea.vmem [#allocation14], %s337
        %s339 = sld [smem:[#allocation3 + %s41]]
        %s340 = sld [smem:[#allocation4 + %s41]]
        %s341 = sld [smem:[#allocation5 + %s41]]
        %v342 = vld [vmem:[%s285] sm:$0x1]
        %v343 = vld [vmem:[%s293] sm:$0x1]
        %v344 = vadd.f32 %v342, %v343
        %v345 = vld [vmem:[%s301] sm:$0x1]
        %v346 = vsub.f32 %v344, %v345
        %v347 = vld [vmem:[%s6] sm:$0x3]
        %v349 = vlaneseq
        %v350 = vshrl.u32 %v349, 7
        %v351 = vsub.s32 0, %v350
        %v352 = vrot.slane %v346, %v351
        %v354 = vmul.f32 %v352, %v347
        %vm355 = vcmask 1041408
        %v356 = vsel %vm355, %v354, 0.0
        %357 = vadd.xlane.f32.xlu0 %v356
        %v358 = vpop.xlane.xlu0 %357
        %s359 = sld [smem:[#allocation13]]
        %v360 = vstv %s359
        %v361 = vadd.f32 %v358, %v360
        %s362 = sld [smem:[#allocation13 + $0x1]]
        %v363 = vstv %s362
        %v364 = vadd.f32 %v358, %v363
        %v366 = vrot.slane %v364, 1
        %v368 = vsub.f32 %v361, %v366
        %v369 = vxor.u32 %v368, 2147483648
        %v370 = vmul.f32 %v369, 1.442695
        %v371 = vpow.pop %v370
        %v372 = vadd.f32 %v371, 1.0
        %v373 = vrcp.pop %v372
        %v374 = vmul.f32 1.0, %v373
        %v375 = vsub.f32 0.0, %v368
        %v376 = vxor.u32 %v375, 2147483648
        %v377 = vmul.f32 %v376, 1.442695
        %v378 = vpow.pop %v377
        %v379 = vadd.f32 %v378, 1.0
        %v380 = vrcp.pop %v379
        %v381 = vmul.f32 1.0, %v380
        %v382 = vlaneseq
        %v383 = vand.u32 %v382, 127
        %vm384 = vcmp.eq.s32.totalorder %v383, 0
        %vm385 = vcmp.eq.s32.totalorder %v383, 1
        %387 = vset.pattern.permute.xlu0 0
        %388 = vperm.xlu0 %387, %v381
        %v389 = vpop.permute.xlu0 %388
        %v391 = vsel %vm385, %v389, 0.0
        %393 = vset.pattern.permute.xlu0 0
        %394 = vperm.xlu0 %393, %v374
        %v395 = vpop.permute.xlu0 %394
        %v397 = vsel %vm384, %v395, %v391
        %398 = vst [vmem:[%s338] sm:$0x1] %v397
        %s399 = sand.u32 %s175, 1
        %s400 = scalar_lea.sflag [#allocation8], %s399
        %s401 = sand.u32 %s175, 1
        %s402 = scalar_lea.vmem [#allocation14], %s401
        // Predicated region
        $region57: #{tpu_custom_call.1} parent=39 // pred_check
          %p403 = pneg %p185
        $region58: #{tpu_custom_call.1} parent=39 // pred_check_branch
          %405 = sbr.rel (%p403) target = $region60
        $region59: #{tpu_custom_call.1} parent=39 // pred_region
          %s407 = ssub.s32 16, 16
          %408 = vsyncadd %s400, %s407
          %s409 = smul.addr %s41, 16
          %s410 = scalar_lea.hbm %s8, %s409
          %s412 = sshll.u32 %s402, 4
          %s413 = int_to_ptr.vmem [resolvable:$true] %s412
          %415 = dma.vmem_to_hbm [thread:$0]  %s413, 16, %s410, %s400
        $region60: #{tpu_custom_call.1} parent=39 // pred_fallthru
          _
      $region40: #{tpu_custom_call.1} parent=5 // pred_fallthru
        _
      %p416 = scmp.le.s32.totalorder 2, %s36
      // Predicated region
      $region61: #{tpu_custom_call.1} parent=5 // pred_check
        %p417 = pneg %p416
      $region62: #{tpu_custom_call.1} parent=5 // pred_check_branch
        %419 = sbr.rel (%p417) target = $region64
      $region63: #{tpu_custom_call.1} parent=5 // pred_region
        %s420 = ssub.s32 %s36, 2
        // Predicated region
        $region65: #{tpu_custom_call.1} parent=63 // pred_check
          %p421 = pneg %p191
        $region66: #{tpu_custom_call.1} parent=63 // pred_check_branch
          %423 = sbr.rel (%p421) target = $region68
        $region67: #{tpu_custom_call.1} parent=63 // pred_region
          %s424 = sand.u32 %s176, 1
          %s425 = scalar_lea.sflag [#allocation8], %s424
          %s426 = sand.u32 %s176, 1
          %s427 = scalar_lea.vmem [#allocation14], %s426
          %428 = dma.done %s425, 16
        $region68: #{tpu_custom_call.1} parent=63 // pred_fallthru
          _
      $region64: #{tpu_custom_call.1} parent=5 // pred_fallthru
        _
    $region6: #{tpu_custom_call.1} parent=1 // loop_footer
      %s40 = sadd.s32 1, %s36
    $region7: #{tpu_custom_call.1} parent=1 // loop_footer_branch
      %35 = sbr.rel target = $region3
    $region8: #{tpu_custom_call.1} parent=1 // loop_exit
      _
    %429 = vsyncpa [#allocation7], 1
    %s430 = scalar_lea.sflag [#allocation7], 1
    %431 = vsyncpa %s430, 1
    %432 = vsyncpa [#allocation11], 1
    %s433 = scalar_lea.sflag [#allocation11], 1
    %434 = vsyncpa %s433, 1
    %435 = vsyncpa [#allocation8], 1
    %s436 = scalar_lea.sflag [#allocation8], 1
    %437 = vsyncpa %s436, 1
    %438 = vsyncpa [#allocation9], 1
    %s439 = scalar_lea.sflag [#allocation9], 1
    %440 = vsyncpa %s439, 1

</llo_original>
